<compile_context>
chip_gen: v5e
topology: v5e:2x2
jax: 0.10.0
libtpu: 0.0.40
codegen_flags: <defaults>
</compile_context>

<pallas_src>
import jax
import jax.numpy as jnp
from jax.experimental import pallas as pl
from jax.experimental.pallas import tpu as pltpu


def _round_up(x, m):
    return -(-x // m) * m


# ---------------------------------------------------------------------------
# Kernels
# ---------------------------------------------------------------------------
def _graph_first_kernel(at_ref, x_ref, wbd_ref, b_ref, o_ref):
    # xa = x2_block @ A^T_tile : one big MXU dot (M = bb*Cin rows).
    xa = jnp.dot(x_ref[...], at_ref[...],
                 preferred_element_type=jnp.float32)                  # (bb*Cin, tm)
    # Apply W^T per batch element with a single block-diagonal dot.
    y = jnp.dot(wbd_ref[...], xa.astype(wbd_ref.dtype),
                preferred_element_type=jnp.float32)                   # (bb*Cout, tm)
    o_ref[...] = (y + b_ref[...]).astype(o_ref.dtype)


def _xw_first_kernel(at_ref, x_ref, wbd_ref, b_ref, o_ref, z_ref):
    # z = blockdiag(W^T) @ x2_block, computed once per batch block (row tile 0),
    # reused for every A^T column tile (requires the row-tile axis to be sequential).
    @pl.when(pl.program_id(1) == 0)
    def _():
        z = jnp.dot(wbd_ref[...], x_ref[...],
                    preferred_element_type=jnp.float32)               # (bb*Cout, Np)
        z_ref[...] = z.astype(z_ref.dtype)

    y = jnp.dot(z_ref[...], at_ref[...],
                preferred_element_type=jnp.float32)                   # (bb*Cout, tm)
    o_ref[...] = (y + b_ref[...]).astype(o_ref.dtype)


# ---------------------------------------------------------------------------
# Configuration (batch block / row tile / VMEM) selection
# ---------------------------------------------------------------------------
def _select_config(B, N, Cin, Cout, itemsize, xw_first, budget):
    """Returns (bb, tm, Np, est_vmem_bytes)."""
    rows_big = Cout if xw_first else Cin
    sub_mult = max(8, 8 * (4 // max(1, itemsize)))     # 8 f32, 16 bf16, 32 int8

    # Fill ~256 MXU output rows with the batch block (>= both the v5e 128 and
    # v6e/v7x 256 row tiles), while keeping the block-diagonal weight small.
    bb_max = min(B, max(1, -(-256 // rows_big)))
    while bb_max > 1 and bb_max * bb_max * Cin * Cout * itemsize > (2 << 20):
        bb_max -= 1

    def sub_ok(b):
        # Block sublane dims must be multiples of sub_mult unless the block spans
        # the full array (b == B  =>  no batch tiling on that axis).
        return b == B or ((b * Cin) % sub_mult == 0 and (b * Cout) % sub_mult == 0)

    def vmem_use(b, tm, np_):
        u = itemsize * (2 * np_ * tm            # A^T tile (double buffered)
                        + 2 * b * Cin * np_     # x batch block
                        + 2 * b * Cout * tm     # output block
                        + b * b * Cin * Cout    # block-diagonal weight
                        + b * Cout)             # bias column
        if xw_first:
            u += itemsize * b * Cout * np_      # z scratch
        return u

    def best_tiles(b):
        if vmem_use(b, N, N) <= budget:
            return N, N, vmem_use(b, N, N)      # single lane tile, no N padding
        for tm in (2048, 1024, 512, 256, 128):
            if tm >= N:
                continue
            np_ = _round_up(N, tm)
            u = vmem_use(b, tm, np_)
            if u <= budget:
                return tm, np_, u
        return None

    aligned = [b for b in range(bb_max, 0, -1) if sub_ok(b)]
    top = aligned[0] if aligned else 1
    divisors = [b for b in aligned if B % b == 0 and 2 * b >= top]
    safe_last = min(B, sub_mult)                # always layout-legal fallback
    candidates = divisors + aligned + [safe_last]

    for b in candidates:
        tiles = best_tiles(b)
        if tiles is not None:
            return b, tiles[0], tiles[1], tiles[2]

    # Last resort (huge graphs): minimal legal tiling, let vmem_limit follow usage.
    b = safe_last
    tm = 128 if N > 128 else N
    np_ = _round_up(N, tm) if tm != N else N
    return b, tm, np_, vmem_use(b, tm, np_)


# ---------------------------------------------------------------------------
# Public wrapper
# ---------------------------------------------------------------------------
def fixed_graph_conv(x, matrix, weight, bias=None, *, use_bf16_inputs=False,
                     vmem_budget_bytes=None):
    """Pallas TPU forward for FixedGraphConv.

    x: [B, N, Cin]; matrix: [N, N]; weight: [1, Cin, Cout]; bias: [1, Cout] or None.
    Returns squeeze(matrix @ (x @ weight) + bias), matching the torch module.
    """
    B, N, Cin = (int(s) for s in x.shape)
    Cout = int(weight.shape[-1])
    dt = x.dtype
    op_dt = jnp.bfloat16 if (use_bf16_inputs and dt == jnp.float32) else dt
    itemsize = jnp.dtype(op_dt).itemsize

    # Per-generation VMEM budget for the kernel working set.
    try:
        phys_vmem = int(pltpu.get_tpu_info().vmem_capacity_bytes)
    except Exception:  # noqa: BLE001 - conservative fallback when info is unavailable
        phys_vmem = 64 << 20
    budget = (int(vmem_budget_bytes) if vmem_budget_bytes is not None
              else min(int(phys_vmem * 0.3), 40 << 20))

    # Put the cheaper channel dim through the N x N contraction.
    xw_first = Cin > Cout
    bb, tm, Np, est_use = _select_config(B, N, Cin, Cout, itemsize, xw_first, budget)
    b_pad = _round_up(B, bb)
    nb, ni = b_pad // bb, Np // tm

    # --- wrapper-side layout plumbing (cheap vs. the O(B*N^2*C) kernel work) ---------
    a_t = jnp.transpose(matrix).astype(op_dt)                        # A^T, N on lanes
    if Np != N:
        a_t = jnp.pad(a_t, ((0, Np - N), (0, Np - N)))
    x_t = jnp.transpose(x, (0, 2, 1)).astype(op_dt)                  # [B, Cin, N]
    if b_pad != B or Np != N:
        x_t = jnp.pad(x_t, ((0, b_pad - B), (0, 0), (0, Np - N)))
    x2 = x_t.reshape(b_pad * Cin, Np)                                # [B*Cin, N]

    w_t = jnp.transpose(weight.reshape(Cin, Cout)).astype(op_dt)     # W^T [Cout, Cin]
    wbd = jnp.kron(jnp.eye(bb, dtype=op_dt), w_t)                    # blockdiag(W^T)

    if bias is not None:
        b_col = jnp.tile(jnp.reshape(bias, (Cout, 1)).astype(dt), (bb, 1))
    else:
        b_col = jnp.zeros((bb * Cout, 1), dtype=dt)                  # bias=False -> 0

    if xw_first:
        kernel = _xw_first_kernel
        scratch = [pltpu.VMEM((bb * Cout, Np), op_dt)]
        semantics = ("parallel", "arbitrary")      # z init assumes sequential row tiles
    else:
        kernel = _graph_first_kernel
        scratch = []
        semantics = ("parallel", "parallel")       # no cross-tile state; megacore-friendly

    rows_big = Cout if xw_first else Cin
    flops = 2 * b_pad * Np * (Np * rows_big + bb * Cin * Cout)
    bytes_accessed = itemsize * (b_pad * Cin * Np + nb * Np * Np
                                 + bb * bb * Cin * Cout) + \
        jnp.dtype(dt).itemsize * (bb * Cout + b_pad * Cout * Np)

    vmem_limit = int(min(max(int(est_use * 1.5) + (4 << 20), 16 << 20),
                         max(48 << 20, budget + (8 << 20))))

    out2 = pl.pallas_call(
        kernel,
        out_shape=jax.ShapeDtypeStruct((b_pad * Cout, Np), dt),
        grid_spec=pltpu.PrefetchScalarGridSpec(
            num_scalar_prefetch=0,
            grid=(nb, ni),                                           # (batch blocks, row tiles)
            in_specs=[
                pl.BlockSpec((Np, tm), lambda b, i: (0, i)),                 # A^T column tile
                pl.BlockSpec((bb * Cin, Np), lambda b, i: (b, 0)),           # x slab batch block
                pl.BlockSpec((bb * Cout, bb * Cin), lambda b, i: (0, 0)),    # blockdiag W^T
                pl.BlockSpec((bb * Cout, 1), lambda b, i: (0, 0)),           # bias column
            ],
            out_specs=pl.BlockSpec((bb * Cout, tm), lambda b, i: (b, i)),
            scratch_shapes=scratch,
        ),
        compiler_params=pltpu.CompilerParams(
            dimension_semantics=semantics,
            vmem_limit_bytes=vmem_limit),
        cost_estimate=pl.CostEstimate(flops=int(flops), transcendentals=0,
                                      bytes_accessed=int(bytes_accessed)),
    )(a_t, x2, wbd, b_col)

    out = out2.reshape(b_pad, Cout, Np)[:B, :, :N]
    out = jnp.transpose(out, (0, 2, 1))                              # [B, N, Cout]
    return jnp.squeeze(out)                                          # torch .squeeze()


# ---------------------------------------------------------------------------
# Reference + self-test
# ---------------------------------------------------------------------------
def _xavier_uniform(key, shape, fan_in, fan_out, dtype=jnp.float32):
    limit = (6.0 / (fan_in + fan_out)) ** 0.5
    return jax.random.uniform(key, shape, minval=-limit, maxval=limit, dtype=dtype)


def _reference(x, matrix, weight, bias):
    b = 0.0 if bias is None else bias
    return jnp.squeeze(jnp.matmul(matrix, jnp.matmul(x, weight)) + b)


if __name__ == "__main__":
    key = jax.random.PRNGKey(0)
    k1, k2, k3, k4, k5 = jax.random.split(key, 5)

    # Fixed graph operator: row-normalized random adjacency (deterministic).
    N = 16
    adj = (jax.random.uniform(k2, (N, N)) > 0.5).astype(jnp.float32) + jnp.eye(N)
    matrix = adj / jnp.sum(adj, axis=-1, keepdims=True)

    # Case 1: Cin < Cout, bias=False (module default) -> graph-first path,
    # both grid axes parallel, batch-collapsed (bb*Cin, N) @ (N, tm) dot.
    B, Cin, Cout = 2, 4, 8
    weight = _xavier_uniform(k1, (1, Cin, Cout), Cin, Cout)
    x = jax.random.normal(k3, (B, N, Cin), dtype=jnp.float32)
    out1 = jax.block_until_ready(fixed_graph_conv(x, matrix, weight, None))
    ref1 = _reference(x, matrix, weight, None)
    assert out1.shape == ref1.shape
    assert jnp.allclose(out1, ref1, atol=1e-4, rtol=1e-4)

    # Case 2: Cin > Cout, bias=True, B=5 -> xw-first path with block-diagonal W^T
    # and VMEM z-scratch (no batch padding: bb == B).
    B2, Cin2, Cout2 = 5, 8, 4
    weight2 = _xavier_uniform(k4, (1, Cin2, Cout2), Cin2, Cout2)
    bias2 = 0.1 * jax.random.normal(k5, (1, Cout2), dtype=jnp.float32)
    x2 = jax.random.normal(k3, (B2, N, Cin2), dtype=jnp.float32)
    out2 = jax.block_until_ready(fixed_graph_conv(x2, matrix, weight2, bias2))
    ref2 = _reference(x2, matrix, weight2, bias2)
    assert out2.shape == ref2.shape
    assert jnp.allclose(out2, ref2, atol=1e-4, rtol=1e-4)

    print("KERNEL_OK")
</pallas_src>

<mosaic_0001>
module attributes {stable_mosaic.version = 11 : i64} {
  func.func @_graph_first_kernel(%arg0: i32, %arg1: i32, %arg2: memref<16x16xf32, #tpu.memory_space<vmem>>, %arg3: memref<8x16xf32, #tpu.memory_space<vmem>>, %arg4: memref<16x8xf32, #tpu.memory_space<vmem>>, %arg5: memref<16x1xf32, #tpu.memory_space<vmem>>, %arg6: memref<16x16xf32, #tpu.memory_space<vmem>>) attributes {dimension_semantics = [#tpu.dimension_semantics<parallel>, #tpu.dimension_semantics<parallel>], iteration_bounds = array<i64: 1, 1>, scalar_prefetch = 0 : i64, scratch_operands = 0 : i64, tpu.core_type = #tpu.core_type<tc>, window_params = [{transform_indices = @transform_0, window_bounds = array<i64: 16, 16>}, {transform_indices = @transform_1, window_bounds = array<i64: 8, 16>}, {pipeline_mode = #tpu.pipeline_mode<synchronous>, transform_indices = @transform_2, window_bounds = array<i64: 16, 8>}, {pipeline_mode = #tpu.pipeline_mode<synchronous>, transform_indices = @transform_3, window_bounds = array<i64: 16, 1>}, {transform_indices = @transform_4, window_bounds = array<i64: 16, 16>}]} {
    %c0 = arith.constant 0 : index
    %c0_0 = arith.constant 0 : index
    %0 = vector.load %arg3[%c0, %c0_0] : memref<8x16xf32, #tpu.memory_space<vmem>>, vector<8x16xf32>
    %c0_1 = arith.constant 0 : index
    %c0_2 = arith.constant 0 : index
    %1 = vector.load %arg2[%c0_1, %c0_2] : memref<16x16xf32, #tpu.memory_space<vmem>>, vector<16x16xf32>
    %cst = arith.constant dense<0.000000e+00> : vector<8x16xf32>
    %2 = tpu.matmul %0, %1, %cst {dimension_numbers = #tpu.dot_dimension_numbers<[1], [0], [0], [1], [0, 0, 1, 1], [], []>} : vector<8x16xf32>, vector<16x16xf32>, vector<8x16xf32> -> vector<8x16xf32>
    %c0_3 = arith.constant 0 : index
    %c0_4 = arith.constant 0 : index
    %3 = vector.load %arg4[%c0_3, %c0_4] : memref<16x8xf32, #tpu.memory_space<vmem>>, vector<16x8xf32>
    %cst_5 = arith.constant dense<0.000000e+00> : vector<16x16xf32>
    %4 = tpu.matmul %3, %2, %cst_5 {dimension_numbers = #tpu.dot_dimension_numbers<[1], [0], [0], [1], [0, 0, 1, 1], [], []>} : vector<16x8xf32>, vector<8x16xf32>, vector<16x16xf32> -> vector<16x16xf32>
    %c0_6 = arith.constant 0 : index
    %c0_7 = arith.constant 0 : index
    %5 = vector.load %arg5[%c0_6, %c0_7] : memref<16x1xf32, #tpu.memory_space<vmem>>, vector<16x1xf32>
    %6 = vector.broadcast %5 : vector<16x1xf32> to vector<16x16xf32>
    %7 = arith.addf %4, %6 : vector<16x16xf32>
    %c0_8 = arith.constant 0 : index
    %c0_9 = arith.constant 0 : index
    %8 = vector.load %arg6[%c0_8, %c0_9] : memref<16x16xf32, #tpu.memory_space<vmem>>, vector<16x16xf32>
    tpu.vector_store %arg6[%c0_8, %c0_9], %7 {strides = array<i32>} : memref<16x16xf32, #tpu.memory_space<vmem>>, vector<16x16xf32>,
    return
  }
  func.func @transform_0(%arg0: i32, %arg1: i32) -> (i32, i32) {
    %c0_i32 = arith.constant 0 : i32
    %c0_i32_0 = arith.constant 0 : i32
    return %c0_i32, %arg1 : i32, i32
  }
  func.func @transform_1(%arg0: i32, %arg1: i32) -> (i32, i32) {
    %c0_i32 = arith.constant 0 : i32
    %c0_i32_0 = arith.constant 0 : i32
    return %arg0, %c0_i32 : i32, i32
  }
  func.func @transform_2(%arg0: i32, %arg1: i32) -> (i32, i32) {
    %c0_i32 = arith.constant 0 : i32
    %c0_i32_0 = arith.constant 0 : i32
    %c0_i32_1 = arith.constant 0 : i32
    return %c0_i32, %c0_i32_0 : i32, i32
  }
  func.func @transform_3(%arg0: i32, %arg1: i32) -> (i32, i32) {
    %c0_i32 = arith.constant 0 : i32
    %c0_i32_0 = arith.constant 0 : i32
    %c0_i32_1 = arith.constant 0 : i32
    return %c0_i32, %c0_i32_0 : i32, i32
  }
  func.func @transform_4(%arg0: i32, %arg1: i32) -> (i32, i32) {
    %c0_i32 = arith.constant 0 : i32
    return %arg0, %arg1 : i32, i32
  }
}

</mosaic_0001>

<llo_original>
// kernel: tpu_custom_call.1
$region0: #{tpu_custom_call.1}
  #allocation0 [shape = 'u32[]', space=smem, size = 0x4, offset = 0x4, fixed_abs, tag = 'smem constant byte address 0x4 - core index']
  #allocation1 [shape = 'u32[72,128]{1,0:T(1,128)}', space=vmem, size = 0x9000, scoped, tag = 'internal scratch']
  %s0 = inlined_call_operand.vmem [shape: f32[16,16], index: 0, kind: input, shape index: {}]
  %s1 = inlined_call_operand.vmem [shape: f32[8,16], index: 1, kind: input, shape index: {}]
  %s2 = inlined_call_operand.vmem [shape: f32[16,8], index: 2, kind: input, shape index: {}]
  %s3 = inlined_call_operand.vmem [shape: f32[16,1], index: 3, kind: input, shape index: {}]
  %s4 = inlined_call_operand.hbm [shape: f32[16,16], index: 4, kind: output, shape index: {}]
  %s5 = sld [smem:[#allocation0]]
  $region26: #{tpu_custom_call.1} parent=0
    _
  %s7 = ssub.s32 1, %s5
  %s8 = scalar_select 0, %s7, %s5
  $region1: #{tpu_custom_call.1} parent=0
    #allocation2 [shape = 'u8[8192]{0}', space=vmem, size = 0x2000, scoped, tag = 'output window, operand 0, single buffered']
    #allocation3 [shape = 's32[1]{0}', space=sflag, size = 0x4, scoped, tag = 'scoped memory for tpu_custom_call.1']
    %9 = vsyncpa [#allocation3], 0
    // Predicated region
    $region2: #{tpu_custom_call.1} parent=1 // pred_check
      _
    $region3: #{tpu_custom_call.1} parent=1 // pred_check_branch
      %11 = sbr.rel (0) target = $region5
    $region4: #{tpu_custom_call.1} parent=1 // pred_region
      _
    $region5: #{tpu_custom_call.1} parent=1 // pred_fallthru
      _
    // Predicated region
    $region6: #{tpu_custom_call.1} parent=1 // pred_check
      _
    $region7: #{tpu_custom_call.1} parent=1 // pred_check_branch
      %13 = sbr.rel (0) target = $region9
    $region8: #{tpu_custom_call.1} parent=1 // pred_region
      _
    $region9: #{tpu_custom_call.1} parent=1 // pred_fallthru
      _
    // Predicated region
    $region10: #{tpu_custom_call.1} parent=1 // pred_check
      _
    $region11: #{tpu_custom_call.1} parent=1 // pred_check_branch
      %15 = sbr.rel (0) target = $region13
    $region12: #{tpu_custom_call.1} parent=1 // pred_region
      _
    $region13: #{tpu_custom_call.1} parent=1 // pred_fallthru
      _
    // Predicated region
    $region14: #{tpu_custom_call.1} parent=1 // pred_check
      _
    $region15: #{tpu_custom_call.1} parent=1 // pred_check_branch
      %17 = sbr.rel (0) target = $region17
    $region16: #{tpu_custom_call.1} parent=1 // pred_region
      _
    $region17: #{tpu_custom_call.1} parent=1 // pred_fallthru
      _
    %v18 = vld [vmem:[%s1] sm:$0xff]
    %v19 = vld [vmem:[%s0] sm:$0xff]
    %v20 = vld [vmem:[%s0 + $0x8] sm:$0xff]
    %vm21 = vcmask 130048
    %v23 = vsel %vm21, %v18, 0
    %25 = vmatpush.msra.mxu0 0.0
    %26 = vmatpush.msra.mxu0 0.0
    %27 = vmatpush.msra.mxu0 0.0
    %28 = vmatpush.msra.mxu0 0.0
    %29 = vmatpush.msra.mxu0 0.0
    %30 = vmatpush.msra.mxu0 0.0
    %31 = vmatpush.msra.mxu0 0.0
    %32 = vmatpush.msra.mxu0 0.0
    %33 = vmatpush.msra.mxu0 0.0
    %34 = vmatpush.msra.mxu0 0.0
    %35 = vmatpush.msra.mxu0 0.0
    %36 = vmatpush.msra.mxu0 0.0
    %37 = vmatpush.msra.mxu0 0.0
    %38 = vmatpush.msra.mxu0 0.0
    %39 = vmatpush.msra.mxu0 %v20
    %40 = vmatpush.msra.mxu0 %v19
    %41 = vmatmul.f32.gmra.mxu0 %v23
    %v42 = vpop.f32.mrf.mxu0
    %v43 = vadd.f32 0.0, %v42
    %44 = vdwg.mxu0
    %v45 = vld [vmem:[%s2] sm:$0xff]
    %v46 = vld [vmem:[%s2 + $0x8] sm:$0xff]
    %v47 = vld [vmem:[%s3] sm:$0xff]
    %v48 = vld [vmem:[%s3 + $0x8] sm:$0xff]
    %50 = vset.pattern.permute.xlu0 0
    %51 = vperm.xlu0 %50, %v47
    %v52 = vpop.permute.xlu0 %51
    %55 = vset.pattern.permute.xlu0 0
    %56 = vperm.xlu0 %55, %v48
    %v57 = vpop.permute.xlu0 %56
    %vm59 = vcmask 64512
    %v61 = vsel %vm59, %v45, 0
    %v64 = vsel %vm59, %v46, 0
    %66 = vmatpush.msra.mxu0 0.0
    %67 = vmatpush.msra.mxu0 0.0
    %68 = vmatpush.msra.mxu0 0.0
    %69 = vmatpush.msra.mxu0 0.0
    %70 = vmatpush.msra.mxu0 0.0
    %71 = vmatpush.msra.mxu0 0.0
    %72 = vmatpush.msra.mxu0 0.0
    %73 = vmatpush.msra.mxu0 0.0
    %74 = vmatpush.msra.mxu0 0.0
    %75 = vmatpush.msra.mxu0 0.0
    %76 = vmatpush.msra.mxu0 0.0
    %77 = vmatpush.msra.mxu0 0.0
    %78 = vmatpush.msra.mxu0 0.0
    %79 = vmatpush.msra.mxu0 0.0
    %80 = vmatpush.msra.mxu0 0.0
    %81 = vmatpush.msra.mxu0 %v43
    %82 = vmatmul.f32.gmra.mxu0 %v61
    %v83 = vpop.f32.mrf.mxu0
    %v84 = vadd.f32 %v52, %v83
    %85 = vmatmul.f32.gmra.mxu0 %v64
    %v86 = vpop.f32.mrf.mxu0
    %v87 = vadd.f32 %v57, %v86
    %88 = vdwg.mxu0
    %89 = vst.msk [vmem:[#allocation2] sm:$0xff] %vm21, %v84
    %90 = vst.msk [vmem:[#allocation2 + $0x8] sm:$0xff] %vm21, %v87
    // Predicated region
    $region18: #{tpu_custom_call.1} parent=1 // pred_check
      _
    $region19: #{tpu_custom_call.1} parent=1 // pred_check_branch
      %92 = sbr.rel (0) target = $region21
    $region20: #{tpu_custom_call.1} parent=1 // pred_region
      %94 = vsyncadd [#allocation3], 0
      %s95 = sshll.u32 [#allocation2], 4
      %s96 = int_to_ptr.vmem [resolvable:$true] %s95
      %s97 = sshll.u32 %s4, 4
      %s98 = int_to_ptr.hbm [resolvable:$true] %s97
      %103 = dma.vmem_to_hbm [thread:$0]  %s96, 256, %s98, [#allocation3], 128, 128, 8
    $region21: #{tpu_custom_call.1} parent=1 // pred_fallthru
      _
    // Predicated region
    $region22: #{tpu_custom_call.1} parent=1 // pred_check
      _
    $region23: #{tpu_custom_call.1} parent=1 // pred_check_branch
      %105 = sbr.rel (0) target = $region25
    $region24: #{tpu_custom_call.1} parent=1 // pred_region
      %107 = dma.done [#allocation3], 256
    $region25: #{tpu_custom_call.1} parent=1 // pred_fallthru
      _
    %108 = vsyncpa [#allocation3], 1

</llo_original>
